<compile_context>
chip_gen: v7x
topology: tpu7x:2x2x1
jax: 0.10.0
libtpu: 0.0.40
codegen_flags: <defaults>
</compile_context>

<pallas_src>
import functools

import jax
import jax.numpy as jnp
from jax.experimental import pallas as pl
from jax.experimental.pallas import tpu as pltpu

LANE = 128  # padded hidden / embed / class width (one vreg lane row)


# ----------------------------------------------------------------------------
# Fused kernel: conv1 -> relu -> conv2 -> relu -> conv3 -> pool -> classifier
# ----------------------------------------------------------------------------
def gin_fused_kernel(a_ref, p_ref, x_ref, w_ref, b_ref, o_ref):
    """Entire GIN forward; activations stay in VMEM/vregs, single HBM store."""
    Hp = w_ref.shape[1]  # padded hidden width (128)

    def linear(z, k):
        # Static, 128-row-aligned slices of the packed weight/bias slabs.
        w = w_ref[k * Hp:(k + 1) * Hp, :]
        b = b_ref[k:k + 1, :]
        return jnp.dot(z, w, preferred_element_type=jnp.float32) + b

    def gin_layer(h, k, relu_after):
        # Â @ h : neighbor aggregation + folded (1+eps)·self term, one MXU
        # matmul. Â is re-read from its ref each layer (streamed, not held live).
        z = jnp.dot(a_ref[...].astype(jnp.float32), h,
                    preferred_element_type=jnp.float32)
        z = jnp.maximum(linear(z, 2 * k), 0.0)          # Linear -> ReLU (GIN MLP)
        z = linear(z, 2 * k + 1)                        # Linear
        if relu_after:                                  # F.relu after conv1/conv2
            z = jnp.maximum(z, 0.0)
        return z

    h = x_ref[...]                                      # [N, Hp] lane-dense
    h = gin_layer(h, 0, True)                           # conv1 -> relu -> dropout(id)
    h = gin_layer(h, 1, True)                           # conv2 -> relu -> dropout(id)
    h = gin_layer(h, 2, False)                          # conv3

    # global_add_pool as P @ h, then the classifier MLP.
    pooled = jnp.dot(p_ref[...], h, preferred_element_type=jnp.float32)  # [G_pad, Hp]
    g = jnp.maximum(linear(pooled, 6), 0.0)
    o_ref[...] = linear(g, 7)                           # lane-dense unmasked store


# ----------------------------------------------------------------------------
# pallas_call wrapper (single block, no grid)
# ----------------------------------------------------------------------------
def gin_fused_forward(A_hat, P_pad, x, w_slab, b_slab, *, num_graphs, num_classes):
    N = x.shape[0]
    Hp = w_slab.shape[1]
    G_pad = P_pad.shape[0]

    args = (A_hat, P_pad, x, w_slab, b_slab)

    # Advisory cost estimate (matmul flops + bytes moved once).
    flops = 3 * (2 * N * N * Hp + 2 * 2 * N * Hp * Hp)           # 3 GIN layers
    flops += 2 * G_pad * N * Hp + 2 * 2 * G_pad * Hp * Hp        # pool + classifier
    in_bytes = sum(int(a.size) * a.dtype.itemsize for a in args)
    out_bytes = G_pad * Hp * 4

    # Explicit VMEM budget: operands (double-buffered) + activation headroom.
    vmem_limit = int(min(96 << 20,
                         max(16 << 20,
                             2 * (in_bytes + out_bytes) + 8 * N * Hp * 4 + (4 << 20))))

    out = pl.pallas_call(
        gin_fused_kernel,
        out_shape=jax.ShapeDtypeStruct((G_pad, Hp), jnp.float32),
        compiler_params=pltpu.CompilerParams(vmem_limit_bytes=vmem_limit),
        cost_estimate=pl.CostEstimate(flops=int(flops), transcendentals=0,
                                      bytes_accessed=int(in_bytes + out_bytes)),
    )(*args)
    # Pad rows (graphs >= num_graphs) carry bias propagation; pad columns are
    # exact zeros. Slice both off here.
    return out[:num_graphs, :num_classes]


# ----------------------------------------------------------------------------
# Glue: parameter packing, graph operators, embedding lookup, jitted forward
# ----------------------------------------------------------------------------
def pack_params(params):
    """Pack all weights/biases into two lane-dense slabs (built once per model)."""
    Hp = LANE

    def pad_w(w):
        r, c = w.shape
        return jnp.pad(w, ((0, Hp - r), (0, Hp - c)))

    def pad_b(b):
        b = b.reshape(1, -1)
        return jnp.pad(b, ((0, 0), (0, Hp - b.shape[1])))

    order = ["c1_w1", "c1_w2", "c2_w1", "c2_w2", "c3_w1", "c3_w2",
             "mlp_w1", "mlp_w2"]
    w_slab = jnp.concatenate([pad_w(params[n]) for n in order], axis=0)      # [8*Hp, Hp]
    b_slab = jnp.concatenate([pad_b(params[n.replace("_w", "_b")])
                              for n in order], axis=0)                        # [8, Hp]
    emb_pad = jnp.pad(params["embedding"],
                      ((0, 0), (0, Hp - params["embedding"].shape[1])))       # [V, Hp]
    return emb_pad, w_slab, b_slab


def build_graph_operators(edge_index, batch, num_nodes, num_graphs, eps=0.0):
    """Â = A + (1+eps)·I (bf16, exact for small-integer edge counts) and P[g,n]."""
    src, dst = edge_index[0], edge_index[1]
    A = jnp.zeros((num_nodes, num_nodes), jnp.float32).at[dst, src].add(1.0)
    A_hat = (A + (1.0 + eps) * jnp.eye(num_nodes, dtype=jnp.float32)
             ).astype(jnp.bfloat16)
    g_pad = max(8, pl.cdiv(num_graphs, 8) * 8)
    # Rows >= num_graphs are all zeros -> pad rows never pollute real pooled rows.
    P = (jnp.arange(g_pad)[:, None] == batch[None, :]).astype(jnp.float32)
    return A_hat, P


@functools.partial(jax.jit, static_argnames=("num_graphs", "num_classes"))
def gin_forward(emb_pad, w_slab, b_slab, x_onehot, A_hat, P_pad, *,
                num_graphs, num_classes):
    # Embedding: argmax over one-hot features -> lane-dense [N, 128] rows (glue).
    idx = jnp.argmax(x_onehot, axis=1)
    h = jnp.take(emb_pad, idx, axis=0)
    return gin_fused_forward(A_hat, P_pad, h, w_slab, b_slab,
                             num_graphs=num_graphs, num_classes=num_classes)


def init_params(key, num_node_features, embed_dim, hidden, num_classes):
    keys = jax.random.split(key, 16)

    def lin(k, din, dout, scale=0.1):
        return (scale * jax.random.normal(k, (din, dout), jnp.float32),
                jnp.zeros((1, dout), jnp.float32))

    c1_w1, c1_b1 = lin(keys[0], embed_dim, hidden)
    c1_w2, c1_b2 = lin(keys[1], hidden, hidden)
    c2_w1, c2_b1 = lin(keys[2], hidden, hidden)
    c2_w2, c2_b2 = lin(keys[3], hidden, hidden)
    c3_w1, c3_b1 = lin(keys[4], hidden, hidden)
    c3_w2, c3_b2 = lin(keys[5], hidden, hidden)
    mlp_w1, mlp_b1 = lin(keys[6], hidden, hidden)
    mlp_w2, mlp_b2 = lin(keys[7], hidden, num_classes)
    # TODO(synk): reference loads embeddings from ./data/embeddings.npy; use a
    # deterministic random table in-script instead.
    embedding = 0.1 * jax.random.normal(keys[8], (num_node_features, embed_dim),
                                        jnp.float32)
    return dict(
        embedding=embedding,
        c1_w1=c1_w1, c1_b1=c1_b1, c1_w2=c1_w2, c1_b2=c1_b2,
        c2_w1=c2_w1, c2_b1=c2_b1, c2_w2=c2_w2, c2_b2=c2_b2,
        c3_w1=c3_w1, c3_b1=c3_b1, c3_w2=c3_w2, c3_b2=c3_b2,
        mlp_w1=mlp_w1, mlp_b1=mlp_b1, mlp_w2=mlp_w2, mlp_b2=mlp_b2,
    )


if __name__ == "__main__":
    key = jax.random.PRNGKey(0)
    NUM_NODE_FEATURES = 8
    EMBED_DIM = 50
    HIDDEN = 16
    NUM_CLASSES = 4
    N = 16                     # total nodes (2 graphs of 8 nodes each)
    NUM_GRAPHS = 2

    k_feat, k_param = jax.random.split(key)

    # One-hot node features (argmax recovers the label, as in the dataset).
    feat_idx = jax.random.randint(k_feat, (N,), 0, NUM_NODE_FEATURES)
    x_onehot = jax.nn.one_hot(feat_idx, NUM_NODE_FEATURES, dtype=jnp.float32)

    # Bidirectional ring within each graph of 8 nodes.
    src_list, dst_list = [], []
    for g in range(NUM_GRAPHS):
        base = g * 8
        for i in range(8):
            a, b = base + i, base + (i + 1) % 8
            src_list += [a, b]
            dst_list += [b, a]
    edge_index = jnp.array([src_list, dst_list], dtype=jnp.int32)
    batch = jnp.array([0] * 8 + [1] * 8, dtype=jnp.int32)

    params = init_params(k_param, NUM_NODE_FEATURES, EMBED_DIM, HIDDEN,
                         NUM_CLASSES)

    # Hoisted out of the per-forward hot path: packed params + graph operators.
    emb_pad, w_slab, b_slab = pack_params(params)
    A_hat, P_pad = build_graph_operators(edge_index, batch, N, NUM_GRAPHS)
    A_hat = jax.block_until_ready(A_hat)

    out = gin_forward(emb_pad, w_slab, b_slab, x_onehot, A_hat, P_pad,
                      num_graphs=NUM_GRAPHS, num_classes=NUM_CLASSES)
    out = jax.block_until_ready(out)
    assert out.shape == (NUM_GRAPHS, NUM_CLASSES)
    assert bool(jnp.all(jnp.isfinite(out)))
    print("KERNEL_OK")
</pallas_src>

<mosaic_0001>
module attributes {stable_mosaic.version = 11 : i64} {
  func.func @gin_fused_kernel(%arg0: memref<16x16xbf16, #tpu.memory_space<vmem>>, %arg1: memref<8x16xf32, #tpu.memory_space<vmem>>, %arg2: memref<16x128xf32, #tpu.memory_space<vmem>>, %arg3: memref<1024x128xf32, #tpu.memory_space<vmem>>, %arg4: memref<8x128xf32, #tpu.memory_space<vmem>>, %arg5: memref<8x128xf32, #tpu.memory_space<vmem>>) attributes {dimension_semantics = [], scalar_prefetch = 0 : i64, scratch_operands = 0 : i64, tpu.core_type = #tpu.core_type<tc>} {
    %c0 = arith.constant 0 : index
    %c0_0 = arith.constant 0 : index
    %0 = vector.load %arg2[%c0, %c0_0] : memref<16x128xf32, #tpu.memory_space<vmem>>, vector<16x128xf32>
    %c0_1 = arith.constant 0 : index
    %c0_2 = arith.constant 0 : index
    %1 = vector.load %arg0[%c0_1, %c0_2] : memref<16x16xbf16, #tpu.memory_space<vmem>>, vector<16x16xbf16>
    %2 = arith.extf %1 : vector<16x16xbf16> to vector<16x16xf32>
    %cst = arith.constant dense<0.000000e+00> : vector<16x128xf32>
    %3 = tpu.matmul %2, %0, %cst {dimension_numbers = #tpu.dot_dimension_numbers<[1], [0], [0], [1], [0, 0, 1, 1], [], []>} : vector<16x16xf32>, vector<16x128xf32>, vector<16x128xf32> -> vector<16x128xf32>
    %c0_3 = arith.constant 0 : index
    %c0_4 = arith.constant 0 : index
    %4 = vector.load %arg3[%c0_3, %c0_4] : memref<1024x128xf32, #tpu.memory_space<vmem>>, vector<128x128xf32>
    %c0_5 = arith.constant 0 : index
    %c0_6 = arith.constant 0 : index
    %5 = vector.load %arg4[%c0_5, %c0_6] : memref<8x128xf32, #tpu.memory_space<vmem>>, vector<1x128xf32>
    %cst_7 = arith.constant dense<0.000000e+00> : vector<16x128xf32>
    %6 = tpu.matmul %3, %4, %cst_7 {dimension_numbers = #tpu.dot_dimension_numbers<[1], [0], [0], [1], [0, 0, 1, 1], [], []>} : vector<16x128xf32>, vector<128x128xf32>, vector<16x128xf32> -> vector<16x128xf32>
    %7 = vector.broadcast %5 : vector<1x128xf32> to vector<16x128xf32>
    %8 = arith.addf %6, %7 : vector<16x128xf32>
    %cst_8 = arith.constant 0.000000e+00 : f32
    %9 = vector.broadcast %cst_8 : f32 to vector<16x128xf32>
    %10 = arith.maximumf %8, %9 : vector<16x128xf32>
    %c128 = arith.constant 128 : index
    %c0_9 = arith.constant 0 : index
    %11 = vector.load %arg3[%c128, %c0_9] : memref<1024x128xf32, #tpu.memory_space<vmem>>, vector<128x128xf32>
    %c1 = arith.constant 1 : index
    %c0_10 = arith.constant 0 : index
    %12 = vector.load %arg4[%c1, %c0_10] : memref<8x128xf32, #tpu.memory_space<vmem>>, vector<1x128xf32>
    %cst_11 = arith.constant dense<0.000000e+00> : vector<16x128xf32>
    %13 = tpu.matmul %10, %11, %cst_11 {dimension_numbers = #tpu.dot_dimension_numbers<[1], [0], [0], [1], [0, 0, 1, 1], [], []>} : vector<16x128xf32>, vector<128x128xf32>, vector<16x128xf32> -> vector<16x128xf32>
    %14 = vector.broadcast %12 : vector<1x128xf32> to vector<16x128xf32>
    %15 = arith.addf %13, %14 : vector<16x128xf32>
    %cst_12 = arith.constant 0.000000e+00 : f32
    %16 = vector.broadcast %cst_12 : f32 to vector<16x128xf32>
    %17 = arith.maximumf %15, %16 : vector<16x128xf32>
    %c0_13 = arith.constant 0 : index
    %c0_14 = arith.constant 0 : index
    %18 = vector.load %arg0[%c0_13, %c0_14] : memref<16x16xbf16, #tpu.memory_space<vmem>>, vector<16x16xbf16>
    %19 = arith.extf %18 : vector<16x16xbf16> to vector<16x16xf32>
    %cst_15 = arith.constant dense<0.000000e+00> : vector<16x128xf32>
    %20 = tpu.matmul %19, %17, %cst_15 {dimension_numbers = #tpu.dot_dimension_numbers<[1], [0], [0], [1], [0, 0, 1, 1], [], []>} : vector<16x16xf32>, vector<16x128xf32>, vector<16x128xf32> -> vector<16x128xf32>
    %c256 = arith.constant 256 : index
    %c0_16 = arith.constant 0 : index
    %21 = vector.load %arg3[%c256, %c0_16] : memref<1024x128xf32, #tpu.memory_space<vmem>>, vector<128x128xf32>
    %c2 = arith.constant 2 : index
    %c0_17 = arith.constant 0 : index
    %22 = vector.load %arg4[%c2, %c0_17] : memref<8x128xf32, #tpu.memory_space<vmem>>, vector<1x128xf32>
    %cst_18 = arith.constant dense<0.000000e+00> : vector<16x128xf32>
    %23 = tpu.matmul %20, %21, %cst_18 {dimension_numbers = #tpu.dot_dimension_numbers<[1], [0], [0], [1], [0, 0, 1, 1], [], []>} : vector<16x128xf32>, vector<128x128xf32>, vector<16x128xf32> -> vector<16x128xf32>
    %24 = vector.broadcast %22 : vector<1x128xf32> to vector<16x128xf32>
    %25 = arith.addf %23, %24 : vector<16x128xf32>
    %cst_19 = arith.constant 0.000000e+00 : f32
    %26 = vector.broadcast %cst_19 : f32 to vector<16x128xf32>
    %27 = arith.maximumf %25, %26 : vector<16x128xf32>
    %c384 = arith.constant 384 : index
    %c0_20 = arith.constant 0 : index
    %28 = vector.load %arg3[%c384, %c0_20] : memref<1024x128xf32, #tpu.memory_space<vmem>>, vector<128x128xf32>
    %c3 = arith.constant 3 : index
    %c0_21 = arith.constant 0 : index
    %29 = vector.load %arg4[%c3, %c0_21] : memref<8x128xf32, #tpu.memory_space<vmem>>, vector<1x128xf32>
    %cst_22 = arith.constant dense<0.000000e+00> : vector<16x128xf32>
    %30 = tpu.matmul %27, %28, %cst_22 {dimension_numbers = #tpu.dot_dimension_numbers<[1], [0], [0], [1], [0, 0, 1, 1], [], []>} : vector<16x128xf32>, vector<128x128xf32>, vector<16x128xf32> -> vector<16x128xf32>
    %31 = vector.broadcast %29 : vector<1x128xf32> to vector<16x128xf32>
    %32 = arith.addf %30, %31 : vector<16x128xf32>
    %cst_23 = arith.constant 0.000000e+00 : f32
    %33 = vector.broadcast %cst_23 : f32 to vector<16x128xf32>
    %34 = arith.maximumf %32, %33 : vector<16x128xf32>
    %c0_24 = arith.constant 0 : index
    %c0_25 = arith.constant 0 : index
    %35 = vector.load %arg0[%c0_24, %c0_25] : memref<16x16xbf16, #tpu.memory_space<vmem>>, vector<16x16xbf16>
    %36 = arith.extf %35 : vector<16x16xbf16> to vector<16x16xf32>
    %cst_26 = arith.constant dense<0.000000e+00> : vector<16x128xf32>
    %37 = tpu.matmul %36, %34, %cst_26 {dimension_numbers = #tpu.dot_dimension_numbers<[1], [0], [0], [1], [0, 0, 1, 1], [], []>} : vector<16x16xf32>, vector<16x128xf32>, vector<16x128xf32> -> vector<16x128xf32>
    %c512 = arith.constant 512 : index
    %c0_27 = arith.constant 0 : index
    %38 = vector.load %arg3[%c512, %c0_27] : memref<1024x128xf32, #tpu.memory_space<vmem>>, vector<128x128xf32>
    %c4 = arith.constant 4 : index
    %c0_28 = arith.constant 0 : index
    %39 = vector.load %arg4[%c4, %c0_28] : memref<8x128xf32, #tpu.memory_space<vmem>>, vector<1x128xf32>
    %cst_29 = arith.constant dense<0.000000e+00> : vector<16x128xf32>
    %40 = tpu.matmul %37, %38, %cst_29 {dimension_numbers = #tpu.dot_dimension_numbers<[1], [0], [0], [1], [0, 0, 1, 1], [], []>} : vector<16x128xf32>, vector<128x128xf32>, vector<16x128xf32> -> vector<16x128xf32>
    %41 = vector.broadcast %39 : vector<1x128xf32> to vector<16x128xf32>
    %42 = arith.addf %40, %41 : vector<16x128xf32>
    %cst_30 = arith.constant 0.000000e+00 : f32
    %43 = vector.broadcast %cst_30 : f32 to vector<16x128xf32>
    %44 = arith.maximumf %42, %43 : vector<16x128xf32>
    %c640 = arith.constant 640 : index
    %c0_31 = arith.constant 0 : index
    %45 = vector.load %arg3[%c640, %c0_31] : memref<1024x128xf32, #tpu.memory_space<vmem>>, vector<128x128xf32>
    %c5 = arith.constant 5 : index
    %c0_32 = arith.constant 0 : index
    %46 = vector.load %arg4[%c5, %c0_32] : memref<8x128xf32, #tpu.memory_space<vmem>>, vector<1x128xf32>
    %cst_33 = arith.constant dense<0.000000e+00> : vector<16x128xf32>
    %47 = tpu.matmul %44, %45, %cst_33 {dimension_numbers = #tpu.dot_dimension_numbers<[1], [0], [0], [1], [0, 0, 1, 1], [], []>} : vector<16x128xf32>, vector<128x128xf32>, vector<16x128xf32> -> vector<16x128xf32>
    %48 = vector.broadcast %46 : vector<1x128xf32> to vector<16x128xf32>
    %49 = arith.addf %47, %48 : vector<16x128xf32>
    %c0_34 = arith.constant 0 : index
    %c0_35 = arith.constant 0 : index
    %50 = vector.load %arg1[%c0_34, %c0_35] : memref<8x16xf32, #tpu.memory_space<vmem>>, vector<8x16xf32>
    %cst_36 = arith.constant dense<0.000000e+00> : vector<8x128xf32>
    %51 = tpu.matmul %50, %49, %cst_36 {dimension_numbers = #tpu.dot_dimension_numbers<[1], [0], [0], [1], [0, 0, 1, 1], [], []>} : vector<8x16xf32>, vector<16x128xf32>, vector<8x128xf32> -> vector<8x128xf32>
    %c768 = arith.constant 768 : index
    %c0_37 = arith.constant 0 : index
    %52 = vector.load %arg3[%c768, %c0_37] : memref<1024x128xf32, #tpu.memory_space<vmem>>, vector<128x128xf32>
    %c6 = arith.constant 6 : index
    %c0_38 = arith.constant 0 : index
    %53 = vector.load %arg4[%c6, %c0_38] : memref<8x128xf32, #tpu.memory_space<vmem>>, vector<1x128xf32>
    %cst_39 = arith.constant dense<0.000000e+00> : vector<8x128xf32>
    %54 = tpu.matmul %51, %52, %cst_39 {dimension_numbers = #tpu.dot_dimension_numbers<[1], [0], [0], [1], [0, 0, 1, 1], [], []>} : vector<8x128xf32>, vector<128x128xf32>, vector<8x128xf32> -> vector<8x128xf32>
    %55 = vector.broadcast %53 : vector<1x128xf32> to vector<8x128xf32>
    %56 = arith.addf %54, %55 : vector<8x128xf32>
    %cst_40 = arith.constant 0.000000e+00 : f32
    %57 = vector.broadcast %cst_40 : f32 to vector<8x128xf32>
    %58 = arith.maximumf %56, %57 : vector<8x128xf32>
    %c896 = arith.constant 896 : index
    %c0_41 = arith.constant 0 : index
    %59 = vector.load %arg3[%c896, %c0_41] : memref<1024x128xf32, #tpu.memory_space<vmem>>, vector<128x128xf32>
    %c7 = arith.constant 7 : index
    %c0_42 = arith.constant 0 : index
    %60 = vector.load %arg4[%c7, %c0_42] : memref<8x128xf32, #tpu.memory_space<vmem>>, vector<1x128xf32>
    %cst_43 = arith.constant dense<0.000000e+00> : vector<8x128xf32>
    %61 = tpu.matmul %58, %59, %cst_43 {dimension_numbers = #tpu.dot_dimension_numbers<[1], [0], [0], [1], [0, 0, 1, 1], [], []>} : vector<8x128xf32>, vector<128x128xf32>, vector<8x128xf32> -> vector<8x128xf32>
    %62 = vector.broadcast %60 : vector<1x128xf32> to vector<8x128xf32>
    %63 = arith.addf %61, %62 : vector<8x128xf32>
    %c0_44 = arith.constant 0 : index
    %c0_45 = arith.constant 0 : index
    %64 = vector.load %arg5[%c0_44, %c0_45] : memref<8x128xf32, #tpu.memory_space<vmem>>, vector<8x128xf32>
    tpu.vector_store %arg5[%c0_44, %c0_45], %63 {strides = array<i32>} : memref<8x128xf32, #tpu.memory_space<vmem>>, vector<8x128xf32>,
    return
  }
}

</mosaic_0001>

<llo_original>
// kernel: gin_forward.1
$region0: #{gin_forward.1}
  #allocation0 [shape = 'u32[]', space=smem, size = 0x4, offset = 0x4, fixed_abs, tag = 'smem constant byte address 0x4 - core index']
  #allocation1 [shape = 'u32[144,128]{1,0:T(1,128)}', space=vmem, size = 0x12000, scoped, tag = 'internal scratch']
  %s0 = inlined_call_operand.vmem [shape: bf16[16,16], index: 0, kind: input, shape index: {}]
  %s1 = inlined_call_operand.vmem [shape: f32[8,16], index: 1, kind: input, shape index: {}]
  %s2 = inlined_call_operand.vmem [shape: f32[16,128], index: 2, kind: input, shape index: {}]
  %s3 = inlined_call_operand.hbm [shape: f32[1024,128], index: 3, kind: input, shape index: {}]
  %s4 = inlined_call_operand.vmem [shape: f32[8,128], index: 4, kind: input, shape index: {}]
  %s5 = inlined_call_operand.vmem [shape: f32[8,128], index: 5, kind: output, shape index: {}]
  %s6 = sld [smem:[#allocation0]]
  $region34: #{gin_forward.1} parent=0
    _
  %s8 = ssub.s32 1, %s6
  %s9 = scalar_select 0, %s8, %s6
  $region1: #{gin_forward.1} parent=0
    #allocation2 [shape = 'u8[524288]{0}', space=vmem, size = 0x80000, scoped, tag = 'input window, operand 3, single buffered']
    #allocation3 [shape = 's32[1]{0}', space=sflag, size = 0x4, scoped, tag = 'scoped memory for gin_forward.1']
    %10 = vsyncpa [#allocation3], 0
    // Predicated region
    $region2: #{gin_forward.1} parent=1 // pred_check
      _
    $region3: #{gin_forward.1} parent=1 // pred_check_branch
      %12 = sbr.rel (0) target = $region5
    $region4: #{gin_forward.1} parent=1 // pred_region
      _
    $region5: #{gin_forward.1} parent=1 // pred_fallthru
      _
    // Predicated region
    $region6: #{gin_forward.1} parent=1 // pred_check
      _
    $region7: #{gin_forward.1} parent=1 // pred_check_branch
      %14 = sbr.rel (0) target = $region9
    $region8: #{gin_forward.1} parent=1 // pred_region
      _
    $region9: #{gin_forward.1} parent=1 // pred_fallthru
      _
    // Predicated region
    $region10: #{gin_forward.1} parent=1 // pred_check
      _
    $region11: #{gin_forward.1} parent=1 // pred_check_branch
      %16 = sbr.rel (0) target = $region13
    $region12: #{gin_forward.1} parent=1 // pred_region
      _
    $region13: #{gin_forward.1} parent=1 // pred_fallthru
      _
    // Predicated region
    $region14: #{gin_forward.1} parent=1 // pred_check
      _
    $region15: #{gin_forward.1} parent=1 // pred_check_branch
      %18 = sbr.rel (0) target = $region17
    $region16: #{gin_forward.1} parent=1 // pred_region
      %s20 = ssub.s32 16384, 16384
      %21 = vsyncadd [#allocation3], %s20
      %s22 = sshll.u32 [#allocation2], 4
      %s23 = int_to_ptr.vmem [resolvable:$true] %s22
      %28 = dma.hbm_to_vmem [thread:$0]  %s3, 16384, %s23, [#allocation3], 128, 128, 8
    $region17: #{gin_forward.1} parent=1 // pred_fallthru
      _
    // Predicated region
    $region18: #{gin_forward.1} parent=1 // pred_check
      _
    $region19: #{gin_forward.1} parent=1 // pred_check_branch
      %30 = sbr.rel (0) target = $region21
    $region20: #{gin_forward.1} parent=1 // pred_region
      _
    $region21: #{gin_forward.1} parent=1 // pred_fallthru
      _
    // Predicated region
    $region22: #{gin_forward.1} parent=1 // pred_check
      _
    $region23: #{gin_forward.1} parent=1 // pred_check_branch
      %32 = sbr.rel (0) target = $region25
    $region24: #{gin_forward.1} parent=1 // pred_region
      %33 = dma.done [#allocation3], 16384
    $region25: #{gin_forward.1} parent=1 // pred_fallthru
      _
    %v34 = vld [vmem:[%s2] sm:$0xff]
    %v35 = vld [vmem:[%s2 + $0x8] sm:$0xff]
    %v36 = vld [vmem:[%s0] sm:$0xf]
    %v37 = vld [vmem:[%s0 + $0x4] sm:$0xf]
    %v38 = vunpack.c.l.bf16 %v36
    %v39 = vunpack.c.l.bf16 %v37
    %vm40 = vcmask 130048
    %v42 = vsel %vm40, %v38, 0
    %v45 = vsel %vm40, %v39, 0
    %47 = vmatprep.subr.mxu0 0.0
    %48 = vmatpush1.msra.mxu0 %v34
    %49 = vmatprep.subr.mxu0 0.0
    %50 = vmatpush1.msra.mxu0 %v35
    %51 = vmatprep.subr.mxu0 0.0
    %52 = vmatpush1.msra.mxu0 0.0
    %53 = vmatprep.subr.mxu0 0.0
    %54 = vmatpush1.msra.mxu0 0.0
    %55 = vmatprep.subr.mxu0 0.0
    %56 = vmatpush1.msra.mxu0 0.0
    %57 = vmatprep.subr.mxu0 0.0
    %58 = vmatpush1.msra.mxu0 0.0
    %59 = vmatprep.subr.mxu0 0.0
    %60 = vmatpush1.msra.mxu0 0.0
    %61 = vmatprep.subr.mxu0 0.0
    %62 = vmatpush1.msra.mxu0 0.0
    %63 = vmatprep.subr.mxu0 0.0
    %64 = vmatpush1.msra.mxu0 0.0
    %65 = vmatprep.subr.mxu0 0.0
    %66 = vmatpush1.msra.mxu0 0.0
    %67 = vmatprep.subr.mxu0 0.0
    %68 = vmatpush1.msra.mxu0 0.0
    %69 = vmatprep.subr.mxu0 0.0
    %70 = vmatpush1.msra.mxu0 0.0
    %71 = vmatprep.subr.mxu0 0.0
    %72 = vmatpush1.msra.mxu0 0.0
    %73 = vmatprep.subr.mxu0 0.0
    %74 = vmatpush1.msra.mxu0 0.0
    %75 = vmatprep.subr.mxu0 0.0
    %76 = vmatpush1.msra.mxu0 0.0
    %77 = vmatprep.subr.mxu0 0.0
    %78 = vmatpush1.msra.mxu0 0.0
    %79 = vmatprep.subr.mxu0 0.0
    %80 = vmatpush1.msra.mxu0 0.0
    %81 = vmatprep.subr.mxu0 0.0
    %82 = vmatpush1.msra.mxu0 0.0
    %83 = vmatprep.subr.mxu0 0.0
    %84 = vmatpush1.msra.mxu0 0.0
    %85 = vmatprep.subr.mxu0 0.0
    %86 = vmatpush1.msra.mxu0 0.0
    %87 = vmatprep.subr.mxu0 0.0
    %88 = vmatpush1.msra.mxu0 0.0
    %89 = vmatprep.subr.mxu0 0.0
    %90 = vmatpush1.msra.mxu0 0.0
    %91 = vmatprep.subr.mxu0 0.0
    %92 = vmatpush1.msra.mxu0 0.0
    %93 = vmatprep.subr.mxu0 0.0
    %94 = vmatpush1.msra.mxu0 0.0
    %95 = vmatprep.subr.mxu0 0.0
    %96 = vmatpush1.msra.mxu0 0.0
    %97 = vmatprep.subr.mxu0 0.0
    %98 = vmatpush1.msra.mxu0 0.0
    %99 = vmatprep.subr.mxu0 0.0
    %100 = vmatpush1.msra.mxu0 0.0
    %101 = vmatprep.subr.mxu0 0.0
    %102 = vmatpush1.msra.mxu0 0.0
    %103 = vmatprep.subr.mxu0 0.0
    %104 = vmatpush1.msra.mxu0 0.0
    %105 = vmatprep.subr.mxu0 0.0
    %106 = vmatpush1.msra.mxu0 0.0
    %107 = vmatprep.subr.mxu0 0.0
    %108 = vmatpush1.msra.mxu0 0.0
    %109 = vmatprep.subr.mxu0 0.0
    %110 = vmatpush1.msra.mxu0 0.0
    %111 = vmatprep.mubr.f32.mxu0 0.0
    %112 = vmatmul.mubr.f32.gmra.mrb[0].mxu0 %v42
    %v113 = vpop.f32.mrb[0].mxu0
    %v114 = vadd.f32 0.0, %v113
    %v115 = vpop.f32.mrb[0].mxu0
    %116 = vmatprep.mubr.f32.mxu0 0.0
    %117 = vmatmul.mubr.f32.gmra.mrb[0].mxu0 %v45
    %v118 = vpop.f32.mrb[0].mxu0
    %v119 = vadd.f32 0.0, %v118
    %v120 = vpop.f32.mrb[0].mxu0
    %121 = vdwg.mxu0
    %v122 = vld [vmem:[#allocation2] sm:$0xff]
    %v123 = vld [vmem:[#allocation2 + $0x8] sm:$0xff]
    %v124 = vld [vmem:[#allocation2 + $0x10] sm:$0xff]
    %v125 = vld [vmem:[#allocation2 + $0x18] sm:$0xff]
    %v126 = vld [vmem:[#allocation2 + $0x20] sm:$0xff]
    %v127 = vld [vmem:[#allocation2 + $0x28] sm:$0xff]
    %v128 = vld [vmem:[#allocation2 + $0x30] sm:$0xff]
    %v129 = vld [vmem:[#allocation2 + $0x38] sm:$0xff]
    %v130 = vld [vmem:[#allocation2 + $0x40] sm:$0xff]
    %v131 = vld [vmem:[#allocation2 + $0x48] sm:$0xff]
    %v132 = vld [vmem:[#allocation2 + $0x50] sm:$0xff]
    %v133 = vld [vmem:[#allocation2 + $0x58] sm:$0xff]
    %v134 = vld [vmem:[#allocation2 + $0x60] sm:$0xff]
    %v135 = vld [vmem:[#allocation2 + $0x68] sm:$0xff]
    %v136 = vld [vmem:[#allocation2 + $0x70] sm:$0xff]
    %v137 = vld [vmem:[#allocation2 + $0x78] sm:$0xff]
    %v138 = vld [vmem:[%s4] sm:$0x1]
    %v139 = vlaneseq
    %v140 = vshrl.u32 %v139, 7
    %v141 = vsub.s32 0, %v140
    %v142 = vrot.slane %v138, %v141
    %143 = vmatprep.subr.mxu0 0.0
    %144 = vmatpush1.msra.mxu0 %v122
    %145 = vmatprep.subr.mxu0 0.0
    %146 = vmatpush1.msra.mxu0 %v123
    %147 = vmatprep.subr.mxu0 0.0
    %148 = vmatpush1.msra.mxu0 %v124
    %149 = vmatprep.subr.mxu0 0.0
    %150 = vmatpush1.msra.mxu0 %v125
    %151 = vmatprep.subr.mxu0 0.0
    %152 = vmatpush1.msra.mxu0 %v126
    %153 = vmatprep.subr.mxu0 0.0
    %154 = vmatpush1.msra.mxu0 %v127
    %155 = vmatprep.subr.mxu0 0.0
    %156 = vmatpush1.msra.mxu0 %v128
    %157 = vmatprep.subr.mxu0 0.0
    %158 = vmatpush1.msra.mxu0 %v129
    %159 = vmatprep.subr.mxu0 0.0
    %160 = vmatpush1.msra.mxu0 %v130
    %161 = vmatprep.subr.mxu0 0.0
    %162 = vmatpush1.msra.mxu0 %v131
    %163 = vmatprep.subr.mxu0 0.0
    %164 = vmatpush1.msra.mxu0 %v132
    %165 = vmatprep.subr.mxu0 0.0
    %166 = vmatpush1.msra.mxu0 %v133
    %167 = vmatprep.subr.mxu0 0.0
    %168 = vmatpush1.msra.mxu0 %v134
    %169 = vmatprep.subr.mxu0 0.0
    %170 = vmatpush1.msra.mxu0 %v135
    %171 = vmatprep.subr.mxu0 0.0
    %172 = vmatpush1.msra.mxu0 %v136
    %173 = vmatprep.subr.mxu0 0.0
    %174 = vmatpush1.msra.mxu0 %v137
    %175 = vmatprep.subr.mxu0 0.0
    %176 = vmatpush1.msra.mxu0 0.0
    %177 = vmatprep.subr.mxu0 0.0
    %178 = vmatpush1.msra.mxu0 0.0
    %179 = vmatprep.subr.mxu0 0.0
    %180 = vmatpush1.msra.mxu0 0.0
    %181 = vmatprep.subr.mxu0 0.0
    %182 = vmatpush1.msra.mxu0 0.0
    %183 = vmatprep.subr.mxu0 0.0
    %184 = vmatpush1.msra.mxu0 0.0
    %185 = vmatprep.subr.mxu0 0.0
    %186 = vmatpush1.msra.mxu0 0.0
    %187 = vmatprep.subr.mxu0 0.0
    %188 = vmatpush1.msra.mxu0 0.0
    %189 = vmatprep.subr.mxu0 0.0
    %190 = vmatpush1.msra.mxu0 0.0
    %191 = vmatprep.subr.mxu0 0.0
    %192 = vmatpush1.msra.mxu0 0.0
    %193 = vmatprep.subr.mxu0 0.0
    %194 = vmatpush1.msra.mxu0 0.0
    %195 = vmatprep.subr.mxu0 0.0
    %196 = vmatpush1.msra.mxu0 0.0
    %197 = vmatprep.subr.mxu0 0.0
    %198 = vmatpush1.msra.mxu0 0.0
    %199 = vmatprep.subr.mxu0 0.0
    %200 = vmatpush1.msra.mxu0 0.0
    %201 = vmatprep.subr.mxu0 0.0
    %202 = vmatpush1.msra.mxu0 0.0
    %203 = vmatprep.subr.mxu0 0.0
    %204 = vmatpush1.msra.mxu0 0.0
    %205 = vmatprep.subr.mxu0 0.0
    %206 = vmatpush1.msra.mxu0 0.0
    %207 = vmatprep.mubr.f32.mxu0 0.0
    %208 = vmatmul.mubr.f32.gmra.mrb[0].mxu0 %v114
    %v209 = vpop.f32.mrb[0].mxu0
    %v210 = vadd.f32 %v142, %v209
    %v211 = vpop.f32.mrb[0].mxu0
    %212 = vmatprep.mubr.f32.mxu0 0.0
    %213 = vmatmul.mubr.f32.gmra.mrb[0].mxu0 %v119
    %v214 = vpop.f32.mrb[0].mxu0
    %v215 = vadd.f32 %v142, %v214
    %v216 = vpop.f32.mrb[0].mxu0
    %217 = vdwg.mxu0
    %v218 = vmax.f32 %v210, 0.0
    %v219 = vmax.f32 %v215, 0.0
    %v220 = vld [vmem:[#allocation2 + $0x80] sm:$0xff]
    %v221 = vld [vmem:[#allocation2 + $0x88] sm:$0xff]
    %v222 = vld [vmem:[#allocation2 + $0x90] sm:$0xff]
    %v223 = vld [vmem:[#allocation2 + $0x98] sm:$0xff]
    %v224 = vld [vmem:[#allocation2 + $0xa0] sm:$0xff]
    %v225 = vld [vmem:[#allocation2 + $0xa8] sm:$0xff]
    %v226 = vld [vmem:[#allocation2 + $0xb0] sm:$0xff]
    %v227 = vld [vmem:[#allocation2 + $0xb8] sm:$0xff]
    %v228 = vld [vmem:[#allocation2 + $0xc0] sm:$0xff]
    %v229 = vld [vmem:[#allocation2 + $0xc8] sm:$0xff]
    %v230 = vld [vmem:[#allocation2 + $0xd0] sm:$0xff]
    %v231 = vld [vmem:[#allocation2 + $0xd8] sm:$0xff]
    %v232 = vld [vmem:[#allocation2 + $0xe0] sm:$0xff]
    %v233 = vld [vmem:[#allocation2 + $0xe8] sm:$0xff]
    %v234 = vld [vmem:[#allocation2 + $0xf0] sm:$0xff]
    %v235 = vld [vmem:[#allocation2 + $0xf8] sm:$0xff]
    %v236 = vld [vmem:[%s4 + $0x1] sm:$0x1]
    %v237 = vlaneseq
    %v238 = vshrl.u32 %v237, 7
    %v239 = vsub.s32 0, %v238
    %v240 = vrot.slane %v236, %v239
    %241 = vmatprep.subr.mxu0 0.0
    %242 = vmatpush1.msra.mxu0 %v220
    %243 = vmatprep.subr.mxu0 0.0
    %244 = vmatpush1.msra.mxu0 %v221
    %245 = vmatprep.subr.mxu0 0.0
    %246 = vmatpush1.msra.mxu0 %v222
    %247 = vmatprep.subr.mxu0 0.0
    %248 = vmatpush1.msra.mxu0 %v223
    %249 = vmatprep.subr.mxu0 0.0
    %250 = vmatpush1.msra.mxu0 %v224
    %251 = vmatprep.subr.mxu0 0.0
    %252 = vmatpush1.msra.mxu0 %v225
    %253 = vmatprep.subr.mxu0 0.0
    %254 = vmatpush1.msra.mxu0 %v226
    %255 = vmatprep.subr.mxu0 0.0
    %256 = vmatpush1.msra.mxu0 %v227
    %257 = vmatprep.subr.mxu0 0.0
    %258 = vmatpush1.msra.mxu0 %v228
    %259 = vmatprep.subr.mxu0 0.0
    %260 = vmatpush1.msra.mxu0 %v229
    %261 = vmatprep.subr.mxu0 0.0
    %262 = vmatpush1.msra.mxu0 %v230
    %263 = vmatprep.subr.mxu0 0.0
    %264 = vmatpush1.msra.mxu0 %v231
    %265 = vmatprep.subr.mxu0 0.0
    %266 = vmatpush1.msra.mxu0 %v232
    %267 = vmatprep.subr.mxu0 0.0
    %268 = vmatpush1.msra.mxu0 %v233
    %269 = vmatprep.subr.mxu0 0.0
    %270 = vmatpush1.msra.mxu0 %v234
    %271 = vmatprep.subr.mxu0 0.0
    %272 = vmatpush1.msra.mxu0 %v235
    %273 = vmatprep.subr.mxu0 0.0
    %274 = vmatpush1.msra.mxu0 0.0
    %275 = vmatprep.subr.mxu0 0.0
    %276 = vmatpush1.msra.mxu0 0.0
    %277 = vmatprep.subr.mxu0 0.0
    %278 = vmatpush1.msra.mxu0 0.0
    %279 = vmatprep.subr.mxu0 0.0
    %280 = vmatpush1.msra.mxu0 0.0
    %281 = vmatprep.subr.mxu0 0.0
    %282 = vmatpush1.msra.mxu0 0.0
    %283 = vmatprep.subr.mxu0 0.0
    %284 = vmatpush1.msra.mxu0 0.0
    %285 = vmatprep.subr.mxu0 0.0
    %286 = vmatpush1.msra.mxu0 0.0
    %287 = vmatprep.subr.mxu0 0.0
    %288 = vmatpush1.msra.mxu0 0.0
    %289 = vmatprep.subr.mxu0 0.0
    %290 = vmatpush1.msra.mxu0 0.0
    %291 = vmatprep.subr.mxu0 0.0
    %292 = vmatpush1.msra.mxu0 0.0
    %293 = vmatprep.subr.mxu0 0.0
    %294 = vmatpush1.msra.mxu0 0.0
    %295 = vmatprep.subr.mxu0 0.0
    %296 = vmatpush1.msra.mxu0 0.0
    %297 = vmatprep.subr.mxu0 0.0
    %298 = vmatpush1.msra.mxu0 0.0
    %299 = vmatprep.subr.mxu0 0.0
    %300 = vmatpush1.msra.mxu0 0.0
    %301 = vmatprep.subr.mxu0 0.0
    %302 = vmatpush1.msra.mxu0 0.0
    %303 = vmatprep.subr.mxu0 0.0
    %304 = vmatpush1.msra.mxu0 0.0
    %305 = vmatprep.mubr.f32.mxu0 0.0
    %306 = vmatmul.mubr.f32.gmra.mrb[0].mxu0 %v218
    %v307 = vpop.f32.mrb[0].mxu0
    %v308 = vadd.f32 %v240, %v307
    %v309 = vpop.f32.mrb[0].mxu0
    %310 = vmatprep.mubr.f32.mxu0 0.0
    %311 = vmatmul.mubr.f32.gmra.mrb[0].mxu0 %v219
    %v312 = vpop.f32.mrb[0].mxu0
    %v313 = vadd.f32 %v240, %v312
    %v314 = vpop.f32.mrb[0].mxu0
    %315 = vdwg.mxu0
    %v316 = vmax.f32 %v308, 0.0
    %v317 = vmax.f32 %v313, 0.0
    %318 = vmatprep.subr.mxu0 0.0
    %319 = vmatpush1.msra.mxu0 %v316
    %320 = vmatprep.subr.mxu0 0.0
    %321 = vmatpush1.msra.mxu0 %v317
    %322 = vmatprep.subr.mxu0 0.0
    %323 = vmatpush1.msra.mxu0 0.0
    %324 = vmatprep.subr.mxu0 0.0
    %325 = vmatpush1.msra.mxu0 0.0
    %326 = vmatprep.subr.mxu0 0.0
    %327 = vmatpush1.msra.mxu0 0.0
    %328 = vmatprep.subr.mxu0 0.0
    %329 = vmatpush1.msra.mxu0 0.0
    %330 = vmatprep.subr.mxu0 0.0
    %331 = vmatpush1.msra.mxu0 0.0
    %332 = vmatprep.subr.mxu0 0.0
    %333 = vmatpush1.msra.mxu0 0.0
    %334 = vmatprep.subr.mxu0 0.0
    %335 = vmatpush1.msra.mxu0 0.0
    %336 = vmatprep.subr.mxu0 0.0
    %337 = vmatpush1.msra.mxu0 0.0
    %338 = vmatprep.subr.mxu0 0.0
    %339 = vmatpush1.msra.mxu0 0.0
    %340 = vmatprep.subr.mxu0 0.0
    %341 = vmatpush1.msra.mxu0 0.0
    %342 = vmatprep.subr.mxu0 0.0
    %343 = vmatpush1.msra.mxu0 0.0
    %344 = vmatprep.subr.mxu0 0.0
    %345 = vmatpush1.msra.mxu0 0.0
    %346 = vmatprep.subr.mxu0 0.0
    %347 = vmatpush1.msra.mxu0 0.0
    %348 = vmatprep.subr.mxu0 0.0
    %349 = vmatpush1.msra.mxu0 0.0
    %350 = vmatprep.subr.mxu0 0.0
    %351 = vmatpush1.msra.mxu0 0.0
    %352 = vmatprep.subr.mxu0 0.0
    %353 = vmatpush1.msra.mxu0 0.0
    %354 = vmatprep.subr.mxu0 0.0
    %355 = vmatpush1.msra.mxu0 0.0
    %356 = vmatprep.subr.mxu0 0.0
    %357 = vmatpush1.msra.mxu0 0.0
    %358 = vmatprep.subr.mxu0 0.0
    %359 = vmatpush1.msra.mxu0 0.0
    %360 = vmatprep.subr.mxu0 0.0
    %361 = vmatpush1.msra.mxu0 0.0
    %362 = vmatprep.subr.mxu0 0.0
    %363 = vmatpush1.msra.mxu0 0.0
    %364 = vmatprep.subr.mxu0 0.0
    %365 = vmatpush1.msra.mxu0 0.0
    %366 = vmatprep.subr.mxu0 0.0
    %367 = vmatpush1.msra.mxu0 0.0
    %368 = vmatprep.subr.mxu0 0.0
    %369 = vmatpush1.msra.mxu0 0.0
    %370 = vmatprep.subr.mxu0 0.0
    %371 = vmatpush1.msra.mxu0 0.0
    %372 = vmatprep.subr.mxu0 0.0
    %373 = vmatpush1.msra.mxu0 0.0
    %374 = vmatprep.subr.mxu0 0.0
    %375 = vmatpush1.msra.mxu0 0.0
    %376 = vmatprep.subr.mxu0 0.0
    %377 = vmatpush1.msra.mxu0 0.0
    %378 = vmatprep.subr.mxu0 0.0
    %379 = vmatpush1.msra.mxu0 0.0
    %380 = vmatprep.subr.mxu0 0.0
    %381 = vmatpush1.msra.mxu0 0.0
    %382 = vmatprep.mubr.f32.mxu0 0.0
    %383 = vmatmul.mubr.f32.gmra.mrb[0].mxu0 %v42
    %v384 = vpop.f32.mrb[0].mxu0
    %v385 = vadd.f32 0.0, %v384
    %v386 = vpop.f32.mrb[0].mxu0
    %387 = vmatprep.mubr.f32.mxu0 0.0
    %388 = vmatmul.mubr.f32.gmra.mrb[0].mxu0 %v45
    %v389 = vpop.f32.mrb[0].mxu0
    %v390 = vadd.f32 0.0, %v389
    %v391 = vpop.f32.mrb[0].mxu0
    %392 = vdwg.mxu0
    %v393 = vld [vmem:[#allocation2 + $0x100] sm:$0xff]
    %v394 = vld [vmem:[#allocation2 + $0x108] sm:$0xff]
    %v395 = vld [vmem:[#allocation2 + $0x110] sm:$0xff]
    %v396 = vld [vmem:[#allocation2 + $0x118] sm:$0xff]
    %v397 = vld [vmem:[#allocation2 + $0x120] sm:$0xff]
    %v398 = vld [vmem:[#allocation2 + $0x128] sm:$0xff]
    %v399 = vld [vmem:[#allocation2 + $0x130] sm:$0xff]
    %v400 = vld [vmem:[#allocation2 + $0x138] sm:$0xff]
    %v401 = vld [vmem:[#allocation2 + $0x140] sm:$0xff]
    %v402 = vld [vmem:[#allocation2 + $0x148] sm:$0xff]
    %v403 = vld [vmem:[#allocation2 + $0x150] sm:$0xff]
    %v404 = vld [vmem:[#allocation2 + $0x158] sm:$0xff]
    %v405 = vld [vmem:[#allocation2 + $0x160] sm:$0xff]
    %v406 = vld [vmem:[#allocation2 + $0x168] sm:$0xff]
    %v407 = vld [vmem:[#allocation2 + $0x170] sm:$0xff]
    %v408 = vld [vmem:[#allocation2 + $0x178] sm:$0xff]
    %v409 = vld [vmem:[%s4 + $0x2] sm:$0x1]
    %v410 = vlaneseq
    %v411 = vshrl.u32 %v410, 7
    %v412 = vsub.s32 0, %v411
    %v413 = vrot.slane %v409, %v412
    %414 = vmatprep.subr.mxu0 0.0
    %415 = vmatpush1.msra.mxu0 %v393
    %416 = vmatprep.subr.mxu0 0.0
    %417 = vmatpush1.msra.mxu0 %v394
    %418 = vmatprep.subr.mxu0 0.0
    %419 = vmatpush1.msra.mxu0 %v395
    %420 = vmatprep.subr.mxu0 0.0
    %421 = vmatpush1.msra.mxu0 %v396
    %422 = vmatprep.subr.mxu0 0.0
    %423 = vmatpush1.msra.mxu0 %v397
    %424 = vmatprep.subr.mxu0 0.0
    %425 = vmatpush1.msra.mxu0 %v398
    %426 = vmatprep.subr.mxu0 0.0
    %427 = vmatpush1.msra.mxu0 %v399
    %428 = vmatprep.subr.mxu0 0.0
    %429 = vmatpush1.msra.mxu0 %v400
    %430 = vmatprep.subr.mxu0 0.0
    %431 = vmatpush1.msra.mxu0 %v401
    %432 = vmatprep.subr.mxu0 0.0
    %433 = vmatpush1.msra.mxu0 %v402
    %434 = vmatprep.subr.mxu0 0.0
    %435 = vmatpush1.msra.mxu0 %v403
    %436 = vmatprep.subr.mxu0 0.0
    %437 = vmatpush1.msra.mxu0 %v404
    %438 = vmatprep.subr.mxu0 0.0
    %439 = vmatpush1.msra.mxu0 %v405
    %440 = vmatprep.subr.mxu0 0.0
    %441 = vmatpush1.msra.mxu0 %v406
    %442 = vmatprep.subr.mxu0 0.0
    %443 = vmatpush1.msra.mxu0 %v407
    %444 = vmatprep.subr.mxu0 0.0
    %445 = vmatpush1.msra.mxu0 %v408
    %446 = vmatprep.subr.mxu0 0.0
    %447 = vmatpush1.msra.mxu0 0.0
    %448 = vmatprep.subr.mxu0 0.0
    %449 = vmatpush1.msra.mxu0 0.0
    %450 = vmatprep.subr.mxu0 0.0
    %451 = vmatpush1.msra.mxu0 0.0
    %452 = vmatprep.subr.mxu0 0.0
    %453 = vmatpush1.msra.mxu0 0.0
    %454 = vmatprep.subr.mxu0 0.0
    %455 = vmatpush1.msra.mxu0 0.0
    %456 = vmatprep.subr.mxu0 0.0
    %457 = vmatpush1.msra.mxu0 0.0
    %458 = vmatprep.subr.mxu0 0.0
    %459 = vmatpush1.msra.mxu0 0.0
    %460 = vmatprep.subr.mxu0 0.0
    %461 = vmatpush1.msra.mxu0 0.0
    %462 = vmatprep.subr.mxu0 0.0
    %463 = vmatpush1.msra.mxu0 0.0
    %464 = vmatprep.subr.mxu0 0.0
    %465 = vmatpush1.msra.mxu0 0.0
    %466 = vmatprep.subr.mxu0 0.0
    %467 = vmatpush1.msra.mxu0 0.0
    %468 = vmatprep.subr.mxu0 0.0
    %469 = vmatpush1.msra.mxu0 0.0
    %470 = vmatprep.subr.mxu0 0.0
    %471 = vmatpush1.msra.mxu0 0.0
    %472 = vmatprep.subr.mxu0 0.0
    %473 = vmatpush1.msra.mxu0 0.0
    %474 = vmatprep.subr.mxu0 0.0
    %475 = vmatpush1.msra.mxu0 0.0
    %476 = vmatprep.subr.mxu0 0.0
    %477 = vmatpush1.msra.mxu0 0.0
    %478 = vmatprep.mubr.f32.mxu0 0.0
    %479 = vmatmul.mubr.f32.gmra.mrb[0].mxu0 %v385
    %v480 = vpop.f32.mrb[0].mxu0
    %v481 = vadd.f32 %v413, %v480
    %v482 = vpop.f32.mrb[0].mxu0
    %483 = vmatprep.mubr.f32.mxu0 0.0
    %484 = vmatmul.mubr.f32.gmra.mrb[0].mxu0 %v390
    %v485 = vpop.f32.mrb[0].mxu0
    %v486 = vadd.f32 %v413, %v485
    %v487 = vpop.f32.mrb[0].mxu0
    %488 = vdwg.mxu0
    %v489 = vmax.f32 %v481, 0.0
    %v490 = vmax.f32 %v486, 0.0
    %v491 = vld [vmem:[#allocation2 + $0x180] sm:$0xff]
    %v492 = vld [vmem:[#allocation2 + $0x188] sm:$0xff]
    %v493 = vld [vmem:[#allocation2 + $0x190] sm:$0xff]
    %v494 = vld [vmem:[#allocation2 + $0x198] sm:$0xff]
    %v495 = vld [vmem:[#allocation2 + $0x1a0] sm:$0xff]
    %v496 = vld [vmem:[#allocation2 + $0x1a8] sm:$0xff]
    %v497 = vld [vmem:[#allocation2 + $0x1b0] sm:$0xff]
    %v498 = vld [vmem:[#allocation2 + $0x1b8] sm:$0xff]
    %v499 = vld [vmem:[#allocation2 + $0x1c0] sm:$0xff]
    %v500 = vld [vmem:[#allocation2 + $0x1c8] sm:$0xff]
    %v501 = vld [vmem:[#allocation2 + $0x1d0] sm:$0xff]
    %v502 = vld [vmem:[#allocation2 + $0x1d8] sm:$0xff]
    %v503 = vld [vmem:[#allocation2 + $0x1e0] sm:$0xff]
    %v504 = vld [vmem:[#allocation2 + $0x1e8] sm:$0xff]
    %v505 = vld [vmem:[#allocation2 + $0x1f0] sm:$0xff]
    %v506 = vld [vmem:[#allocation2 + $0x1f8] sm:$0xff]
    %v507 = vld [vmem:[%s4 + $0x3] sm:$0x1]
    %v508 = vlaneseq
    %v509 = vshrl.u32 %v508, 7
    %v510 = vsub.s32 0, %v509
    %v511 = vrot.slane %v507, %v510
    %512 = vmatprep.subr.mxu0 0.0
    %513 = vmatpush1.msra.mxu0 %v491
    %514 = vmatprep.subr.mxu0 0.0
    %515 = vmatpush1.msra.mxu0 %v492
    %516 = vmatprep.subr.mxu0 0.0
    %517 = vmatpush1.msra.mxu0 %v493
    %518 = vmatprep.subr.mxu0 0.0
    %519 = vmatpush1.msra.mxu0 %v494
    %520 = vmatprep.subr.mxu0 0.0
    %521 = vmatpush1.msra.mxu0 %v495
    %522 = vmatprep.subr.mxu0 0.0
    %523 = vmatpush1.msra.mxu0 %v496
    %524 = vmatprep.subr.mxu0 0.0
    %525 = vmatpush1.msra.mxu0 %v497
    %526 = vmatprep.subr.mxu0 0.0
    %527 = vmatpush1.msra.mxu0 %v498
    %528 = vmatprep.subr.mxu0 0.0
    %529 = vmatpush1.msra.mxu0 %v499
    %530 = vmatprep.subr.mxu0 0.0
    %531 = vmatpush1.msra.mxu0 %v500
    %532 = vmatprep.subr.mxu0 0.0
    %533 = vmatpush1.msra.mxu0 %v501
    %534 = vmatprep.subr.mxu0 0.0
    %535 = vmatpush1.msra.mxu0 %v502
    %536 = vmatprep.subr.mxu0 0.0
    %537 = vmatpush1.msra.mxu0 %v503
    %538 = vmatprep.subr.mxu0 0.0
    %539 = vmatpush1.msra.mxu0 %v504
    %540 = vmatprep.subr.mxu0 0.0
    %541 = vmatpush1.msra.mxu0 %v505
    %542 = vmatprep.subr.mxu0 0.0
    %543 = vmatpush1.msra.mxu0 %v506
    %544 = vmatprep.subr.mxu0 0.0
    %545 = vmatpush1.msra.mxu0 0.0
    %546 = vmatprep.subr.mxu0 0.0
    %547 = vmatpush1.msra.mxu0 0.0
    %548 = vmatprep.subr.mxu0 0.0
    %549 = vmatpush1.msra.mxu0 0.0
    %550 = vmatprep.subr.mxu0 0.0
    %551 = vmatpush1.msra.mxu0 0.0
    %552 = vmatprep.subr.mxu0 0.0
    %553 = vmatpush1.msra.mxu0 0.0
    %554 = vmatprep.subr.mxu0 0.0
    %555 = vmatpush1.msra.mxu0 0.0
    %556 = vmatprep.subr.mxu0 0.0
    %557 = vmatpush1.msra.mxu0 0.0
    %558 = vmatprep.subr.mxu0 0.0
    %559 = vmatpush1.msra.mxu0 0.0
    %560 = vmatprep.subr.mxu0 0.0
    %561 = vmatpush1.msra.mxu0 0.0
    %562 = vmatprep.subr.mxu0 0.0
    %563 = vmatpush1.msra.mxu0 0.0
    %564 = vmatprep.subr.mxu0 0.0
    %565 = vmatpush1.msra.mxu0 0.0
    %566 = vmatprep.subr.mxu0 0.0
    %567 = vmatpush1.msra.mxu0 0.0
    %568 = vmatprep.subr.mxu0 0.0
    %569 = vmatpush1.msra.mxu0 0.0
    %570 = vmatprep.subr.mxu0 0.0
    %571 = vmatpush1.msra.mxu0 0.0
    %572 = vmatprep.subr.mxu0 0.0
    %573 = vmatpush1.msra.mxu0 0.0
    %574 = vmatprep.subr.mxu0 0.0
    %575 = vmatpush1.msra.mxu0 0.0
    %576 = vmatprep.mubr.f32.mxu0 0.0
    %577 = vmatmul.mubr.f32.gmra.mrb[0].mxu0 %v489
    %v578 = vpop.f32.mrb[0].mxu0
    %v579 = vadd.f32 %v511, %v578
    %v580 = vpop.f32.mrb[0].mxu0
    %581 = vmatprep.mubr.f32.mxu0 0.0
    %582 = vmatmul.mubr.f32.gmra.mrb[0].mxu0 %v490
    %v583 = vpop.f32.mrb[0].mxu0
    %v584 = vadd.f32 %v511, %v583
    %v585 = vpop.f32.mrb[0].mxu0
    %586 = vdwg.mxu0
    %v587 = vmax.f32 %v579, 0.0
    %v588 = vmax.f32 %v584, 0.0
    %589 = vmatprep.subr.mxu0 0.0
    %590 = vmatpush1.msra.mxu0 %v587
    %591 = vmatprep.subr.mxu0 0.0
    %592 = vmatpush1.msra.mxu0 %v588
    %593 = vmatprep.subr.mxu0 0.0
    %594 = vmatpush1.msra.mxu0 0.0
    %595 = vmatprep.subr.mxu0 0.0
    %596 = vmatpush1.msra.mxu0 0.0
    %597 = vmatprep.subr.mxu0 0.0
    %598 = vmatpush1.msra.mxu0 0.0
    %599 = vmatprep.subr.mxu0 0.0
    %600 = vmatpush1.msra.mxu0 0.0
    %601 = vmatprep.subr.mxu0 0.0
    %602 = vmatpush1.msra.mxu0 0.0
    %603 = vmatprep.subr.mxu0 0.0
    %604 = vmatpush1.msra.mxu0 0.0
    %605 = vmatprep.subr.mxu0 0.0
    %606 = vmatpush1.msra.mxu0 0.0
    %607 = vmatprep.subr.mxu0 0.0
    %608 = vmatpush1.msra.mxu0 0.0
    %609 = vmatprep.subr.mxu0 0.0
    %610 = vmatpush1.msra.mxu0 0.0
    %611 = vmatprep.subr.mxu0 0.0
    %612 = vmatpush1.msra.mxu0 0.0
    %613 = vmatprep.subr.mxu0 0.0
    %614 = vmatpush1.msra.mxu0 0.0
    %615 = vmatprep.subr.mxu0 0.0
    %616 = vmatpush1.msra.mxu0 0.0
    %617 = vmatprep.subr.mxu0 0.0
    %618 = vmatpush1.msra.mxu0 0.0
    %619 = vmatprep.subr.mxu0 0.0
    %620 = vmatpush1.msra.mxu0 0.0
    %621 = vmatprep.subr.mxu0 0.0
    %622 = vmatpush1.msra.mxu0 0.0
    %623 = vmatprep.subr.mxu0 0.0
    %624 = vmatpush1.msra.mxu0 0.0
    %625 = vmatprep.subr.mxu0 0.0
    %626 = vmatpush1.msra.mxu0 0.0
    %627 = vmatprep.subr.mxu0 0.0
    %628 = vmatpush1.msra.mxu0 0.0
    %629 = vmatprep.subr.mxu0 0.0
    %630 = vmatpush1.msra.mxu0 0.0
    %631 = vmatprep.subr.mxu0 0.0
    %632 = vmatpush1.msra.mxu0 0.0
    %633 = vmatprep.subr.mxu0 0.0
    %634 = vmatpush1.msra.mxu0 0.0
    %635 = vmatprep.subr.mxu0 0.0
    %636 = vmatpush1.msra.mxu0 0.0
    %637 = vmatprep.subr.mxu0 0.0
    %638 = vmatpush1.msra.mxu0 0.0
    %639 = vmatprep.subr.mxu0 0.0
    %640 = vmatpush1.msra.mxu0 0.0
    %641 = vmatprep.subr.mxu0 0.0
    %642 = vmatpush1.msra.mxu0 0.0
    %643 = vmatprep.subr.mxu0 0.0
    %644 = vmatpush1.msra.mxu0 0.0
    %645 = vmatprep.subr.mxu0 0.0
    %646 = vmatpush1.msra.mxu0 0.0
    %647 = vmatprep.subr.mxu0 0.0
    %648 = vmatpush1.msra.mxu0 0.0
    %649 = vmatprep.subr.mxu0 0.0
    %650 = vmatpush1.msra.mxu0 0.0
    %651 = vmatprep.subr.mxu0 0.0
    %652 = vmatpush1.msra.mxu0 0.0
    %653 = vmatprep.mubr.f32.mxu0 0.0
    %654 = vmatmul.mubr.f32.gmra.mrb[0].mxu0 %v42
    %v655 = vpop.f32.mrb[0].mxu0
    %v656 = vadd.f32 0.0, %v655
    %v657 = vpop.f32.mrb[0].mxu0
    %658 = vmatprep.mubr.f32.mxu0 0.0
    %659 = vmatmul.mubr.f32.gmra.mrb[0].mxu0 %v45
    %v660 = vpop.f32.mrb[0].mxu0
    %v661 = vadd.f32 0.0, %v660
    %v662 = vpop.f32.mrb[0].mxu0
    %663 = vdwg.mxu0
    %v664 = vld [vmem:[#allocation2 + $0x200] sm:$0xff]
    %v665 = vld [vmem:[#allocation2 + $0x208] sm:$0xff]
    %v666 = vld [vmem:[#allocation2 + $0x210] sm:$0xff]
    %v667 = vld [vmem:[#allocation2 + $0x218] sm:$0xff]
    %v668 = vld [vmem:[#allocation2 + $0x220] sm:$0xff]
    %v669 = vld [vmem:[#allocation2 + $0x228] sm:$0xff]
    %v670 = vld [vmem:[#allocation2 + $0x230] sm:$0xff]
    %v671 = vld [vmem:[#allocation2 + $0x238] sm:$0xff]
    %v672 = vld [vmem:[#allocation2 + $0x240] sm:$0xff]
    %v673 = vld [vmem:[#allocation2 + $0x248] sm:$0xff]
    %v674 = vld [vmem:[#allocation2 + $0x250] sm:$0xff]
    %v675 = vld [vmem:[#allocation2 + $0x258] sm:$0xff]
    %v676 = vld [vmem:[#allocation2 + $0x260] sm:$0xff]
    %v677 = vld [vmem:[#allocation2 + $0x268] sm:$0xff]
    %v678 = vld [vmem:[#allocation2 + $0x270] sm:$0xff]
    %v679 = vld [vmem:[#allocation2 + $0x278] sm:$0xff]
    %v680 = vld [vmem:[%s4 + $0x4] sm:$0x1]
    %v681 = vlaneseq
    %v682 = vshrl.u32 %v681, 7
    %v683 = vsub.s32 0, %v682
    %v684 = vrot.slane %v680, %v683
    %685 = vmatprep.subr.mxu0 0.0
    %686 = vmatpush1.msra.mxu0 %v664
    %687 = vmatprep.subr.mxu0 0.0
    %688 = vmatpush1.msra.mxu0 %v665
    %689 = vmatprep.subr.mxu0 0.0
    %690 = vmatpush1.msra.mxu0 %v666
    %691 = vmatprep.subr.mxu0 0.0
    %692 = vmatpush1.msra.mxu0 %v667
    %693 = vmatprep.subr.mxu0 0.0
    %694 = vmatpush1.msra.mxu0 %v668
    %695 = vmatprep.subr.mxu0 0.0
    %696 = vmatpush1.msra.mxu0 %v669
    %697 = vmatprep.subr.mxu0 0.0
    %698 = vmatpush1.msra.mxu0 %v670
    %699 = vmatprep.subr.mxu0 0.0
    %700 = vmatpush1.msra.mxu0 %v671
    %701 = vmatprep.subr.mxu0 0.0
    %702 = vmatpush1.msra.mxu0 %v672
    %703 = vmatprep.subr.mxu0 0.0
    %704 = vmatpush1.msra.mxu0 %v673
    %705 = vmatprep.subr.mxu0 0.0
    %706 = vmatpush1.msra.mxu0 %v674
    %707 = vmatprep.subr.mxu0 0.0
    %708 = vmatpush1.msra.mxu0 %v675
    %709 = vmatprep.subr.mxu0 0.0
    %710 = vmatpush1.msra.mxu0 %v676
    %711 = vmatprep.subr.mxu0 0.0
    %712 = vmatpush1.msra.mxu0 %v677
    %713 = vmatprep.subr.mxu0 0.0
    %714 = vmatpush1.msra.mxu0 %v678
    %715 = vmatprep.subr.mxu0 0.0
    %716 = vmatpush1.msra.mxu0 %v679
    %717 = vmatprep.subr.mxu0 0.0
    %718 = vmatpush1.msra.mxu0 0.0
    %719 = vmatprep.subr.mxu0 0.0
    %720 = vmatpush1.msra.mxu0 0.0
    %721 = vmatprep.subr.mxu0 0.0
    %722 = vmatpush1.msra.mxu0 0.0
    %723 = vmatprep.subr.mxu0 0.0
    %724 = vmatpush1.msra.mxu0 0.0
    %725 = vmatprep.subr.mxu0 0.0
    %726 = vmatpush1.msra.mxu0 0.0
    %727 = vmatprep.subr.mxu0 0.0
    %728 = vmatpush1.msra.mxu0 0.0
    %729 = vmatprep.subr.mxu0 0.0
    %730 = vmatpush1.msra.mxu0 0.0
    %731 = vmatprep.subr.mxu0 0.0
    %732 = vmatpush1.msra.mxu0 0.0
    %733 = vmatprep.subr.mxu0 0.0
    %734 = vmatpush1.msra.mxu0 0.0
    %735 = vmatprep.subr.mxu0 0.0
    %736 = vmatpush1.msra.mxu0 0.0
    %737 = vmatprep.subr.mxu0 0.0
    %738 = vmatpush1.msra.mxu0 0.0
    %739 = vmatprep.subr.mxu0 0.0
    %740 = vmatpush1.msra.mxu0 0.0
    %741 = vmatprep.subr.mxu0 0.0
    %742 = vmatpush1.msra.mxu0 0.0
    %743 = vmatprep.subr.mxu0 0.0
    %744 = vmatpush1.msra.mxu0 0.0
    %745 = vmatprep.subr.mxu0 0.0
    %746 = vmatpush1.msra.mxu0 0.0
    %747 = vmatprep.subr.mxu0 0.0
    %748 = vmatpush1.msra.mxu0 0.0
    %749 = vmatprep.mubr.f32.mxu0 0.0
    %750 = vmatmul.mubr.f32.gmra.mrb[0].mxu0 %v656
    %v751 = vpop.f32.mrb[0].mxu0
    %v752 = vadd.f32 %v684, %v751
    %v753 = vpop.f32.mrb[0].mxu0
    %754 = vmatprep.mubr.f32.mxu0 0.0
    %755 = vmatmul.mubr.f32.gmra.mrb[0].mxu0 %v661
    %v756 = vpop.f32.mrb[0].mxu0
    %v757 = vadd.f32 %v684, %v756
    %v758 = vpop.f32.mrb[0].mxu0
    %759 = vdwg.mxu0
    %v760 = vmax.f32 %v752, 0.0
    %v761 = vmax.f32 %v757, 0.0
    %v762 = vld [vmem:[#allocation2 + $0x280] sm:$0xff]
    %v763 = vld [vmem:[#allocation2 + $0x288] sm:$0xff]
    %v764 = vld [vmem:[#allocation2 + $0x290] sm:$0xff]
    %v765 = vld [vmem:[#allocation2 + $0x298] sm:$0xff]
    %v766 = vld [vmem:[#allocation2 + $0x2a0] sm:$0xff]
    %v767 = vld [vmem:[#allocation2 + $0x2a8] sm:$0xff]
    %v768 = vld [vmem:[#allocation2 + $0x2b0] sm:$0xff]
    %v769 = vld [vmem:[#allocation2 + $0x2b8] sm:$0xff]
    %v770 = vld [vmem:[#allocation2 + $0x2c0] sm:$0xff]
    %v771 = vld [vmem:[#allocation2 + $0x2c8] sm:$0xff]
    %v772 = vld [vmem:[#allocation2 + $0x2d0] sm:$0xff]
    %v773 = vld [vmem:[#allocation2 + $0x2d8] sm:$0xff]
    %v774 = vld [vmem:[#allocation2 + $0x2e0] sm:$0xff]
    %v775 = vld [vmem:[#allocation2 + $0x2e8] sm:$0xff]
    %v776 = vld [vmem:[#allocation2 + $0x2f0] sm:$0xff]
    %v777 = vld [vmem:[#allocation2 + $0x2f8] sm:$0xff]
    %v778 = vld [vmem:[%s4 + $0x5] sm:$0x1]
    %v779 = vlaneseq
    %v780 = vshrl.u32 %v779, 7
    %v781 = vsub.s32 0, %v780
    %v782 = vrot.slane %v778, %v781
    %783 = vmatprep.subr.mxu0 0.0
    %784 = vmatpush1.msra.mxu0 %v762
    %785 = vmatprep.subr.mxu0 0.0
    %786 = vmatpush1.msra.mxu0 %v763
    %787 = vmatprep.subr.mxu0 0.0
    %788 = vmatpush1.msra.mxu0 %v764
    %789 = vmatprep.subr.mxu0 0.0
    %790 = vmatpush1.msra.mxu0 %v765
    %791 = vmatprep.subr.mxu0 0.0
    %792 = vmatpush1.msra.mxu0 %v766
    %793 = vmatprep.subr.mxu0 0.0
    %794 = vmatpush1.msra.mxu0 %v767
    %795 = vmatprep.subr.mxu0 0.0
    %796 = vmatpush1.msra.mxu0 %v768
    %797 = vmatprep.subr.mxu0 0.0
    %798 = vmatpush1.msra.mxu0 %v769
    %799 = vmatprep.subr.mxu0 0.0
    %800 = vmatpush1.msra.mxu0 %v770
    %801 = vmatprep.subr.mxu0 0.0
    %802 = vmatpush1.msra.mxu0 %v771
    %803 = vmatprep.subr.mxu0 0.0
    %804 = vmatpush1.msra.mxu0 %v772
    %805 = vmatprep.subr.mxu0 0.0
    %806 = vmatpush1.msra.mxu0 %v773
    %807 = vmatprep.subr.mxu0 0.0
    %808 = vmatpush1.msra.mxu0 %v774
    %809 = vmatprep.subr.mxu0 0.0
    %810 = vmatpush1.msra.mxu0 %v775
    %811 = vmatprep.subr.mxu0 0.0
    %812 = vmatpush1.msra.mxu0 %v776
    %813 = vmatprep.subr.mxu0 0.0
    %814 = vmatpush1.msra.mxu0 %v777
    %815 = vmatprep.subr.mxu0 0.0
    %816 = vmatpush1.msra.mxu0 0.0
    %817 = vmatprep.subr.mxu0 0.0
    %818 = vmatpush1.msra.mxu0 0.0
    %819 = vmatprep.subr.mxu0 0.0
    %820 = vmatpush1.msra.mxu0 0.0
    %821 = vmatprep.subr.mxu0 0.0
    %822 = vmatpush1.msra.mxu0 0.0
    %823 = vmatprep.subr.mxu0 0.0
    %824 = vmatpush1.msra.mxu0 0.0
    %825 = vmatprep.subr.mxu0 0.0
    %826 = vmatpush1.msra.mxu0 0.0
    %827 = vmatprep.subr.mxu0 0.0
    %828 = vmatpush1.msra.mxu0 0.0
    %829 = vmatprep.subr.mxu0 0.0
    %830 = vmatpush1.msra.mxu0 0.0
    %831 = vmatprep.subr.mxu0 0.0
    %832 = vmatpush1.msra.mxu0 0.0
    %833 = vmatprep.subr.mxu0 0.0
    %834 = vmatpush1.msra.mxu0 0.0
    %835 = vmatprep.subr.mxu0 0.0
    %836 = vmatpush1.msra.mxu0 0.0
    %837 = vmatprep.subr.mxu0 0.0
    %838 = vmatpush1.msra.mxu0 0.0
    %839 = vmatprep.subr.mxu0 0.0
    %840 = vmatpush1.msra.mxu0 0.0
    %841 = vmatprep.subr.mxu0 0.0
    %842 = vmatpush1.msra.mxu0 0.0
    %843 = vmatprep.subr.mxu0 0.0
    %844 = vmatpush1.msra.mxu0 0.0
    %845 = vmatprep.subr.mxu0 0.0
    %846 = vmatpush1.msra.mxu0 0.0
    %847 = vmatprep.mubr.f32.mxu0 0.0
    %848 = vmatmul.mubr.f32.gmra.mrb[0].mxu0 %v760
    %v849 = vpop.f32.mrb[0].mxu0
    %v850 = vadd.f32 %v782, %v849
    %v851 = vpop.f32.mrb[0].mxu0
    %852 = vmatprep.mubr.f32.mxu0 0.0
    %853 = vmatmul.mubr.f32.gmra.mrb[0].mxu0 %v761
    %v854 = vpop.f32.mrb[0].mxu0
    %v855 = vadd.f32 %v782, %v854
    %v856 = vpop.f32.mrb[0].mxu0
    %857 = vdwg.mxu0
    %v858 = vld [vmem:[%s1] sm:$0xff]
    %v860 = vsel %vm40, %v858, 0
    %862 = vmatprep.subr.mxu0 0.0
    %863 = vmatpush1.msra.mxu0 %v850
    %864 = vmatprep.subr.mxu0 0.0
    %865 = vmatpush1.msra.mxu0 %v855
    %866 = vmatprep.subr.mxu0 0.0
    %867 = vmatpush1.msra.mxu0 0.0
    %868 = vmatprep.subr.mxu0 0.0
    %869 = vmatpush1.msra.mxu0 0.0
    %870 = vmatprep.subr.mxu0 0.0
    %871 = vmatpush1.msra.mxu0 0.0
    %872 = vmatprep.subr.mxu0 0.0
    %873 = vmatpush1.msra.mxu0 0.0
    %874 = vmatprep.subr.mxu0 0.0
    %875 = vmatpush1.msra.mxu0 0.0
    %876 = vmatprep.subr.mxu0 0.0
    %877 = vmatpush1.msra.mxu0 0.0
    %878 = vmatprep.subr.mxu0 0.0
    %879 = vmatpush1.msra.mxu0 0.0
    %880 = vmatprep.subr.mxu0 0.0
    %881 = vmatpush1.msra.mxu0 0.0
    %882 = vmatprep.subr.mxu0 0.0
    %883 = vmatpush1.msra.mxu0 0.0
    %884 = vmatprep.subr.mxu0 0.0
    %885 = vmatpush1.msra.mxu0 0.0
    %886 = vmatprep.subr.mxu0 0.0
    %887 = vmatpush1.msra.mxu0 0.0
    %888 = vmatprep.subr.mxu0 0.0
    %889 = vmatpush1.msra.mxu0 0.0
    %890 = vmatprep.subr.mxu0 0.0
    %891 = vmatpush1.msra.mxu0 0.0
    %892 = vmatprep.subr.mxu0 0.0
    %893 = vmatpush1.msra.mxu0 0.0
    %894 = vmatprep.subr.mxu0 0.0
    %895 = vmatpush1.msra.mxu0 0.0
    %896 = vmatprep.subr.mxu0 0.0
    %897 = vmatpush1.msra.mxu0 0.0
    %898 = vmatprep.subr.mxu0 0.0
    %899 = vmatpush1.msra.mxu0 0.0
    %900 = vmatprep.subr.mxu0 0.0
    %901 = vmatpush1.msra.mxu0 0.0
    %902 = vmatprep.subr.mxu0 0.0
    %903 = vmatpush1.msra.mxu0 0.0
    %904 = vmatprep.subr.mxu0 0.0
    %905 = vmatpush1.msra.mxu0 0.0
    %906 = vmatprep.subr.mxu0 0.0
    %907 = vmatpush1.msra.mxu0 0.0
    %908 = vmatprep.subr.mxu0 0.0
    %909 = vmatpush1.msra.mxu0 0.0
    %910 = vmatprep.subr.mxu0 0.0
    %911 = vmatpush1.msra.mxu0 0.0
    %912 = vmatprep.subr.mxu0 0.0
    %913 = vmatpush1.msra.mxu0 0.0
    %914 = vmatprep.subr.mxu0 0.0
    %915 = vmatpush1.msra.mxu0 0.0
    %916 = vmatprep.subr.mxu0 0.0
    %917 = vmatpush1.msra.mxu0 0.0
    %918 = vmatprep.subr.mxu0 0.0
    %919 = vmatpush1.msra.mxu0 0.0
    %920 = vmatprep.subr.mxu0 0.0
    %921 = vmatpush1.msra.mxu0 0.0
    %922 = vmatprep.subr.mxu0 0.0
    %923 = vmatpush1.msra.mxu0 0.0
    %924 = vmatprep.subr.mxu0 0.0
    %925 = vmatpush1.msra.mxu0 0.0
    %926 = vmatprep.mubr.f32.mxu0 0.0
    %927 = vmatmul.mubr.f32.gmra.mrb[0].mxu0 %v860
    %v928 = vpop.f32.mrb[0].mxu0
    %v929 = vadd.f32 0.0, %v928
    %v930 = vpop.f32.mrb[0].mxu0
    %931 = vdwg.mxu0
    %v932 = vld [vmem:[#allocation2 + $0x300] sm:$0xff]
    %v933 = vld [vmem:[#allocation2 + $0x308] sm:$0xff]
    %v934 = vld [vmem:[#allocation2 + $0x310] sm:$0xff]
    %v935 = vld [vmem:[#allocation2 + $0x318] sm:$0xff]
    %v936 = vld [vmem:[#allocation2 + $0x320] sm:$0xff]
    %v937 = vld [vmem:[#allocation2 + $0x328] sm:$0xff]
    %v938 = vld [vmem:[#allocation2 + $0x330] sm:$0xff]
    %v939 = vld [vmem:[#allocation2 + $0x338] sm:$0xff]
    %v940 = vld [vmem:[#allocation2 + $0x340] sm:$0xff]
    %v941 = vld [vmem:[#allocation2 + $0x348] sm:$0xff]
    %v942 = vld [vmem:[#allocation2 + $0x350] sm:$0xff]
    %v943 = vld [vmem:[#allocation2 + $0x358] sm:$0xff]
    %v944 = vld [vmem:[#allocation2 + $0x360] sm:$0xff]
    %v945 = vld [vmem:[#allocation2 + $0x368] sm:$0xff]
    %v946 = vld [vmem:[#allocation2 + $0x370] sm:$0xff]
    %v947 = vld [vmem:[#allocation2 + $0x378] sm:$0xff]
    %v948 = vld [vmem:[%s4 + $0x6] sm:$0x1]
    %v949 = vlaneseq
    %v950 = vshrl.u32 %v949, 7
    %v951 = vsub.s32 0, %v950
    %v952 = vrot.slane %v948, %v951
    %953 = vmatprep.subr.mxu0 0.0
    %954 = vmatpush1.msra.mxu0 %v932
    %955 = vmatprep.subr.mxu0 0.0
    %956 = vmatpush1.msra.mxu0 %v933
    %957 = vmatprep.subr.mxu0 0.0
    %958 = vmatpush1.msra.mxu0 %v934
    %959 = vmatprep.subr.mxu0 0.0
    %960 = vmatpush1.msra.mxu0 %v935
    %961 = vmatprep.subr.mxu0 0.0
    %962 = vmatpush1.msra.mxu0 %v936
    %963 = vmatprep.subr.mxu0 0.0
    %964 = vmatpush1.msra.mxu0 %v937
    %965 = vmatprep.subr.mxu0 0.0
    %966 = vmatpush1.msra.mxu0 %v938
    %967 = vmatprep.subr.mxu0 0.0
    %968 = vmatpush1.msra.mxu0 %v939
    %969 = vmatprep.subr.mxu0 0.0
    %970 = vmatpush1.msra.mxu0 %v940
    %971 = vmatprep.subr.mxu0 0.0
    %972 = vmatpush1.msra.mxu0 %v941
    %973 = vmatprep.subr.mxu0 0.0
    %974 = vmatpush1.msra.mxu0 %v942
    %975 = vmatprep.subr.mxu0 0.0
    %976 = vmatpush1.msra.mxu0 %v943
    %977 = vmatprep.subr.mxu0 0.0
    %978 = vmatpush1.msra.mxu0 %v944
    %979 = vmatprep.subr.mxu0 0.0
    %980 = vmatpush1.msra.mxu0 %v945
    %981 = vmatprep.subr.mxu0 0.0
    %982 = vmatpush1.msra.mxu0 %v946
    %983 = vmatprep.subr.mxu0 0.0
    %984 = vmatpush1.msra.mxu0 %v947
    %985 = vmatprep.subr.mxu0 0.0
    %986 = vmatpush1.msra.mxu0 0.0
    %987 = vmatprep.subr.mxu0 0.0
    %988 = vmatpush1.msra.mxu0 0.0
    %989 = vmatprep.subr.mxu0 0.0
    %990 = vmatpush1.msra.mxu0 0.0
    %991 = vmatprep.subr.mxu0 0.0
    %992 = vmatpush1.msra.mxu0 0.0
    %993 = vmatprep.subr.mxu0 0.0
    %994 = vmatpush1.msra.mxu0 0.0
    %995 = vmatprep.subr.mxu0 0.0
    %996 = vmatpush1.msra.mxu0 0.0
    %997 = vmatprep.subr.mxu0 0.0
    %998 = vmatpush1.msra.mxu0 0.0
    %999 = vmatprep.subr.mxu0 0.0
    %1000 = vmatpush1.msra.mxu0 0.0
    %1001 = vmatprep.subr.mxu0 0.0
    %1002 = vmatpush1.msra.mxu0 0.0
    %1003 = vmatprep.subr.mxu0 0.0
    %1004 = vmatpush1.msra.mxu0 0.0
    %1005 = vmatprep.subr.mxu0 0.0
    %1006 = vmatpush1.msra.mxu0 0.0
    %1007 = vmatprep.subr.mxu0 0.0
    %1008 = vmatpush1.msra.mxu0 0.0
    %1009 = vmatprep.subr.mxu0 0.0
    %1010 = vmatpush1.msra.mxu0 0.0
    %1011 = vmatprep.subr.mxu0 0.0
    %1012 = vmatpush1.msra.mxu0 0.0
    %1013 = vmatprep.subr.mxu0 0.0
    %1014 = vmatpush1.msra.mxu0 0.0
    %1015 = vmatprep.subr.mxu0 0.0
    %1016 = vmatpush1.msra.mxu0 0.0
    %1017 = vmatprep.mubr.f32.mxu0 0.0
    %1018 = vmatmul.mubr.f32.gmra.mrb[0].mxu0 %v929
    %v1019 = vpop.f32.mrb[0].mxu0
    %v1020 = vadd.f32 %v952, %v1019
    %v1021 = vpop.f32.mrb[0].mxu0
    %1022 = vdwg.mxu0
    %v1023 = vmax.f32 %v1020, 0.0
    %v1024 = vld [vmem:[#allocation2 + $0x380] sm:$0xff]
    %v1025 = vld [vmem:[#allocation2 + $0x388] sm:$0xff]
    %v1026 = vld [vmem:[#allocation2 + $0x390] sm:$0xff]
    %v1027 = vld [vmem:[#allocation2 + $0x398] sm:$0xff]
    %v1028 = vld [vmem:[#allocation2 + $0x3a0] sm:$0xff]
    %v1029 = vld [vmem:[#allocation2 + $0x3a8] sm:$0xff]
    %v1030 = vld [vmem:[#allocation2 + $0x3b0] sm:$0xff]
    %v1031 = vld [vmem:[#allocation2 + $0x3b8] sm:$0xff]
    %v1032 = vld [vmem:[#allocation2 + $0x3c0] sm:$0xff]
    %v1033 = vld [vmem:[#allocation2 + $0x3c8] sm:$0xff]
    %v1034 = vld [vmem:[#allocation2 + $0x3d0] sm:$0xff]
    %v1035 = vld [vmem:[#allocation2 + $0x3d8] sm:$0xff]
    %v1036 = vld [vmem:[#allocation2 + $0x3e0] sm:$0xff]
    %v1037 = vld [vmem:[#allocation2 + $0x3e8] sm:$0xff]
    %v1038 = vld [vmem:[#allocation2 + $0x3f0] sm:$0xff]
    %v1039 = vld [vmem:[#allocation2 + $0x3f8] sm:$0xff]
    %v1040 = vld [vmem:[%s4 + $0x7] sm:$0x1]
    %v1041 = vlaneseq
    %v1042 = vshrl.u32 %v1041, 7
    %v1043 = vsub.s32 0, %v1042
    %v1044 = vrot.slane %v1040, %v1043
    %1045 = vmatprep.subr.mxu0 0.0
    %1046 = vmatpush1.msra.mxu0 %v1024
    %1047 = vmatprep.subr.mxu0 0.0
    %1048 = vmatpush1.msra.mxu0 %v1025
    %1049 = vmatprep.subr.mxu0 0.0
    %1050 = vmatpush1.msra.mxu0 %v1026
    %1051 = vmatprep.subr.mxu0 0.0
    %1052 = vmatpush1.msra.mxu0 %v1027
    %1053 = vmatprep.subr.mxu0 0.0
    %1054 = vmatpush1.msra.mxu0 %v1028
    %1055 = vmatprep.subr.mxu0 0.0
    %1056 = vmatpush1.msra.mxu0 %v1029
    %1057 = vmatprep.subr.mxu0 0.0
    %1058 = vmatpush1.msra.mxu0 %v1030
    %1059 = vmatprep.subr.mxu0 0.0
    %1060 = vmatpush1.msra.mxu0 %v1031
    %1061 = vmatprep.subr.mxu0 0.0
    %1062 = vmatpush1.msra.mxu0 %v1032
    %1063 = vmatprep.subr.mxu0 0.0
    %1064 = vmatpush1.msra.mxu0 %v1033
    %1065 = vmatprep.subr.mxu0 0.0
    %1066 = vmatpush1.msra.mxu0 %v1034
    %1067 = vmatprep.subr.mxu0 0.0
    %1068 = vmatpush1.msra.mxu0 %v1035
    %1069 = vmatprep.subr.mxu0 0.0
    %1070 = vmatpush1.msra.mxu0 %v1036
    %1071 = vmatprep.subr.mxu0 0.0
    %1072 = vmatpush1.msra.mxu0 %v1037
    %1073 = vmatprep.subr.mxu0 0.0
    %1074 = vmatpush1.msra.mxu0 %v1038
    %1075 = vmatprep.subr.mxu0 0.0
    %1076 = vmatpush1.msra.mxu0 %v1039
    %1077 = vmatprep.subr.mxu0 0.0
    %1078 = vmatpush1.msra.mxu0 0.0
    %1079 = vmatprep.subr.mxu0 0.0
    %1080 = vmatpush1.msra.mxu0 0.0
    %1081 = vmatprep.subr.mxu0 0.0
    %1082 = vmatpush1.msra.mxu0 0.0
    %1083 = vmatprep.subr.mxu0 0.0
    %1084 = vmatpush1.msra.mxu0 0.0
    %1085 = vmatprep.subr.mxu0 0.0
    %1086 = vmatpush1.msra.mxu0 0.0
    %1087 = vmatprep.subr.mxu0 0.0
    %1088 = vmatpush1.msra.mxu0 0.0
    %1089 = vmatprep.subr.mxu0 0.0
    %1090 = vmatpush1.msra.mxu0 0.0
    %1091 = vmatprep.subr.mxu0 0.0
    %1092 = vmatpush1.msra.mxu0 0.0
    %1093 = vmatprep.subr.mxu0 0.0
    %1094 = vmatpush1.msra.mxu0 0.0
    %1095 = vmatprep.subr.mxu0 0.0
    %1096 = vmatpush1.msra.mxu0 0.0
    %1097 = vmatprep.subr.mxu0 0.0
    %1098 = vmatpush1.msra.mxu0 0.0
    %1099 = vmatprep.subr.mxu0 0.0
    %1100 = vmatpush1.msra.mxu0 0.0
    %1101 = vmatprep.subr.mxu0 0.0
    %1102 = vmatpush1.msra.mxu0 0.0
    %1103 = vmatprep.subr.mxu0 0.0
    %1104 = vmatpush1.msra.mxu0 0.0
    %1105 = vmatprep.subr.mxu0 0.0
    %1106 = vmatpush1.msra.mxu0 0.0
    %1107 = vmatprep.subr.mxu0 0.0
    %1108 = vmatpush1.msra.mxu0 0.0
    %1109 = vmatprep.mubr.f32.mxu0 0.0
    %1110 = vmatmul.mubr.f32.gmra.mrb[0].mxu0 %v1023
    %v1111 = vpop.f32.mrb[0].mxu0
    %v1112 = vadd.f32 %v1044, %v1111
    %v1113 = vpop.f32.mrb[0].mxu0
    %1114 = vdwg.mxu0
    %1115 = vst [vmem:[%s5] sm:$0xff] %v1112
    // Predicated region
    $region26: #{gin_forward.1} parent=1 // pred_check
      _
    $region27: #{gin_forward.1} parent=1 // pred_check_branch
      %1117 = sbr.rel (0) target = $region29
    $region28: #{gin_forward.1} parent=1 // pred_region
      _
    $region29: #{gin_forward.1} parent=1 // pred_fallthru
      _
    // Predicated region
    $region30: #{gin_forward.1} parent=1 // pred_check
      _
    $region31: #{gin_forward.1} parent=1 // pred_check_branch
      %1119 = sbr.rel (0) target = $region33
    $region32: #{gin_forward.1} parent=1 // pred_region
      _
    $region33: #{gin_forward.1} parent=1 // pred_fallthru
      _
    %1120 = vsyncpa [#allocation3], 1

</llo_original>
